<compile_context>
chip_gen: v5e
topology: v5e:2x2
jax: 0.10.0
libtpu: 0.0.40
codegen_flags: <defaults>
</compile_context>

<pallas_src>
import jax
import jax.numpy as jnp
from jax.experimental import pallas as pl
from jax.experimental.pallas import tpu as pltpu

# ---- module hyperparameters (SEModule(in_channels=16, reduction=4)) ----
IN_CH = 16
REDUCTION = 4
RED_CH = IN_CH // REDUCTION          # 4

# ---- example shapes (small; L lane-dense at 128) ----
N = 2
L = 128


def se_kernel(x_ref, p_ref, o_ref):
    """Fused SE block.

    x_ref : (N, C, L)                      o_ref : (N, C, L)
    p_ref : (C + 1, 2*C_red + 1) packed params:
            [:C, :C_red]           = w1[c, o]   (conv1 weight, transposed)
            [:C, C_red:2*C_red]    = w2[c, o]   (conv2 weight)
            [:C, 2*C_red]          = b2[c]
            [C,  :C_red]           = b1[o]
    """
    c = x_ref.shape[1]
    r = (p_ref.shape[1] - 1) // 2
    x = x_ref[...]                                           # (N, C, L) f32

    # Squeeze: adaptive_avg_pool1d(x, 1) == mean over L (lane-axis reduce).
    # keepdims keeps channels on the sublane axis — no relayout.
    s = jnp.mean(x, axis=2, keepdims=True)                   # (N, C, 1)

    # Unpack parameters from the single slab (static slices -> plain loads).
    w1 = p_ref[0:c, 0:r]                                     # (C, C_red)
    w2 = p_ref[0:c, r:2 * r]                                 # (C, C_red)
    b2 = p_ref[0:c, 2 * r:2 * r + 1]                         # (C, 1)
    b1 = p_ref[c:c + 1, 0:r]                                 # (1, C_red)

    # Excite, conv1 (C -> C_red): contract over input channels (sublane reduce).
    z1 = jnp.sum(w1[None, :, :] * s, axis=1, keepdims=True) + b1[None, :, :]   # (N, 1, C_red)
    h = jnp.maximum(z1, 0.0)                                 # ReLU

    # conv2 (C_red -> C): contract over hidden units (4-lane reduce).
    z2 = jnp.sum(w2[None, :, :] * h, axis=2, keepdims=True) + b2[None, :, :]   # (N, C, 1)

    # Sigmoid via tanh (EUP slot; numerically robust).
    gate = 0.5 * (jnp.tanh(0.5 * z2) + 1.0)                  # (N, C, 1)

    # Residual add; gate broadcasts along the lane axis; one lane-dense store.
    o_ref[...] = (x + gate).astype(o_ref.dtype)


def _pack_params(w1, b1, w2, b2):
    """Pack conv weights/biases into one f32 slab of shape (C+1, 2*C_red+1)."""
    c_red, c = w1.shape[0], w1.shape[1]
    slab = jnp.zeros((c + 1, 2 * c_red + 1), dtype=jnp.float32)
    slab = slab.at[0:c, 0:c_red].set(jnp.transpose(w1[:, :, 0]))   # w1[c, o] = torch_w1[o, c, 0]
    slab = slab.at[0:c, c_red:2 * c_red].set(w2[:, :, 0])          # w2[c, o] = torch_w2[c, o, 0]
    slab = slab.at[0:c, 2 * c_red].set(b2)
    slab = slab.at[c, 0:c_red].set(b1)
    return slab


def se_module_forward(x, w1, b1, w2, b2):
    """x: (N, C, L);  w1: (C_red, C, 1); b1: (C_red,); w2: (C, C_red, 1); b2: (C,)."""
    n, c, l = x.shape
    c_red = w1.shape[0]
    params = _pack_params(w1, b1, w2, b2)

    cost = pl.CostEstimate(
        flops=2 * n * c * l + 4 * n * c * c_red + 4 * n * c,      # pool + residual + 2 convs + gate
        transcendentals=n * c,                                    # tanh
        bytes_accessed=2 * n * c * l * 4 + params.size * 4,
    )

    return pl.pallas_call(
        se_kernel,
        out_shape=jax.ShapeDtypeStruct((n, c, l), x.dtype),
        # No grid: one invocation over whole-array VMEM blocks — no pipeline
        # double-buffering, no per-step prologue/epilogue overhead.
        in_specs=[
            pl.BlockSpec(memory_space=pltpu.MemorySpace.VMEM),    # x
            pl.BlockSpec(memory_space=pltpu.MemorySpace.VMEM),    # packed params
        ],
        out_specs=pl.BlockSpec(memory_space=pltpu.MemorySpace.VMEM),
        cost_estimate=cost,
    )(x, params)


def reference_forward(x, w1, b1, w2, b2):
    """Pure-JAX reference mirroring the PyTorch SEModule forward."""
    s = jnp.mean(x, axis=2, keepdims=True)                             # (N, C, 1)
    s1 = jnp.einsum("oc,ncl->nol", w1[:, :, 0], s) + b1.reshape(1, -1, 1)
    s1 = jnp.maximum(s1, 0.0)
    s2 = jnp.einsum("oc,ncl->nol", w2[:, :, 0], s1) + b2.reshape(1, -1, 1)
    return x + jax.nn.sigmoid(s2)


if __name__ == "__main__":
    key = jax.random.PRNGKey(0)
    k_x, k_w1, k_b1, k_w2, k_b2 = jax.random.split(key, 5)

    x = jax.random.normal(k_x, (N, IN_CH, L), dtype=jnp.float32)
    w1 = 0.3 * jax.random.normal(k_w1, (RED_CH, IN_CH, 1), dtype=jnp.float32)
    b1 = 0.1 * jax.random.normal(k_b1, (RED_CH,), dtype=jnp.float32)
    w2 = 0.3 * jax.random.normal(k_w2, (IN_CH, RED_CH, 1), dtype=jnp.float32)
    b2 = 0.1 * jax.random.normal(k_b2, (IN_CH,), dtype=jnp.float32)

    out = se_module_forward(x, w1, b1, w2, b2)
    out = jax.block_until_ready(out)

    ref = reference_forward(x, w1, b1, w2, b2)
    assert out.shape == (N, IN_CH, L)
    assert jnp.allclose(out, ref, atol=1e-4, rtol=1e-4), "mismatch vs reference"

    print("KERNEL_OK")
</pallas_src>

<mosaic_0001>
module attributes {stable_mosaic.version = 11 : i64} {
  func.func @se_kernel(%arg0: memref<2x16x128xf32, #tpu.memory_space<vmem>>, %arg1: memref<17x9xf32, #tpu.memory_space<vmem>>, %arg2: memref<2x16x128xf32, #tpu.memory_space<vmem>>) attributes {dimension_semantics = [], scalar_prefetch = 0 : i64, scratch_operands = 0 : i64, tpu.core_type = #tpu.core_type<tc>} {
    %c0 = arith.constant 0 : index
    %c0_0 = arith.constant 0 : index
    %c0_1 = arith.constant 0 : index
    %0 = vector.load %arg0[%c0, %c0_0, %c0_1] : memref<2x16x128xf32, #tpu.memory_space<vmem>>, vector<2x16x128xf32>
    %cst = arith.constant dense<0.000000e+00> : vector<2x16xf32>
    %1 = vector.multi_reduction <add>, %0, %cst [2] : vector<2x16x128xf32> to vector<2x16xf32>
    %2 = vector.shape_cast %1 : vector<2x16xf32> to vector<2x16x1xf32>
    %cst_2 = arith.constant 1.280000e+02 : f32
    %3 = vector.broadcast %cst_2 : f32 to vector<2x16x1xf32>
    %4 = arith.divf %2, %3 : vector<2x16x1xf32>
    %c0_3 = arith.constant 0 : index
    %c0_4 = arith.constant 0 : index
    %5 = vector.load %arg1[%c0_3, %c0_4] : memref<17x9xf32, #tpu.memory_space<vmem>>, vector<16x4xf32>
    %c0_5 = arith.constant 0 : index
    %c4 = arith.constant 4 : index
    %6 = vector.load %arg1[%c0_5, %c4] : memref<17x9xf32, #tpu.memory_space<vmem>>, vector<16x4xf32>
    %c0_6 = arith.constant 0 : index
    %c8 = arith.constant 8 : index
    %7 = vector.load %arg1[%c0_6, %c8] : memref<17x9xf32, #tpu.memory_space<vmem>>, vector<16x1xf32>
    %c16 = arith.constant 16 : index
    %c0_7 = arith.constant 0 : index
    %8 = vector.load %arg1[%c16, %c0_7] : memref<17x9xf32, #tpu.memory_space<vmem>>, vector<1x4xf32>
    %9 = vector.shape_cast %5 : vector<16x4xf32> to vector<1x16x4xf32>
    %10 = vector.broadcast %9 : vector<1x16x4xf32> to vector<2x16x4xf32>
    %11 = vector.broadcast %4 : vector<2x16x1xf32> to vector<2x16x4xf32>
    %12 = arith.mulf %10, %11 : vector<2x16x4xf32>
    %cst_8 = arith.constant dense<0.000000e+00> : vector<2x4xf32>
    %13 = vector.multi_reduction <add>, %12, %cst_8 [1] : vector<2x16x4xf32> to vector<2x4xf32>
    %14 = vector.shape_cast %13 : vector<2x4xf32> to vector<2x1x4xf32>
    %15 = vector.shape_cast %8 : vector<1x4xf32> to vector<1x1x4xf32>
    %16 = vector.broadcast %15 : vector<1x1x4xf32> to vector<2x1x4xf32>
    %17 = arith.addf %14, %16 : vector<2x1x4xf32>
    %cst_9 = arith.constant 0.000000e+00 : f32
    %18 = vector.broadcast %cst_9 : f32 to vector<2x1x4xf32>
    %19 = arith.maximumf %17, %18 : vector<2x1x4xf32>
    %20 = vector.shape_cast %6 : vector<16x4xf32> to vector<1x16x4xf32>
    %21 = vector.broadcast %20 : vector<1x16x4xf32> to vector<2x16x4xf32>
    %22 = vector.broadcast %19 : vector<2x1x4xf32> to vector<2x16x4xf32>
    %23 = arith.mulf %21, %22 : vector<2x16x4xf32>
    %cst_10 = arith.constant dense<0.000000e+00> : vector<2x16xf32>
    %24 = vector.multi_reduction <add>, %23, %cst_10 [2] : vector<2x16x4xf32> to vector<2x16xf32>
    %25 = vector.shape_cast %24 : vector<2x16xf32> to vector<2x16x1xf32>
    %26 = vector.shape_cast %7 : vector<16x1xf32> to vector<1x16x1xf32>
    %27 = vector.broadcast %26 : vector<1x16x1xf32> to vector<2x16x1xf32>
    %28 = arith.addf %25, %27 : vector<2x16x1xf32>
    %cst_11 = arith.constant 5.000000e-01 : f32
    %29 = vector.broadcast %cst_11 : f32 to vector<2x16x1xf32>
    %30 = arith.mulf %29, %28 : vector<2x16x1xf32>
    %31 = math.tanh %30 : vector<2x16x1xf32>
    %cst_12 = arith.constant 1.000000e+00 : f32
    %32 = vector.broadcast %cst_12 : f32 to vector<2x16x1xf32>
    %33 = arith.addf %31, %32 : vector<2x16x1xf32>
    %cst_13 = arith.constant 5.000000e-01 : f32
    %34 = vector.broadcast %cst_13 : f32 to vector<2x16x1xf32>
    %35 = arith.mulf %34, %33 : vector<2x16x1xf32>
    %36 = vector.broadcast %35 : vector<2x16x1xf32> to vector<2x16x128xf32>
    %37 = arith.addf %0, %36 : vector<2x16x128xf32>
    %c0_14 = arith.constant 0 : index
    %c0_15 = arith.constant 0 : index
    %c0_16 = arith.constant 0 : index
    %38 = vector.load %arg2[%c0_14, %c0_15, %c0_16] : memref<2x16x128xf32, #tpu.memory_space<vmem>>, vector<2x16x128xf32>
    tpu.vector_store %arg2[%c0_14, %c0_15, %c0_16], %37 {strides = array<i32>} : memref<2x16x128xf32, #tpu.memory_space<vmem>>, vector<2x16x128xf32>,
    return
  }
}

</mosaic_0001>

<llo_original>
// kernel: tpu_custom_call.1
$region0: #{tpu_custom_call.1}
  #allocation0 [shape = 'u32[]', space=smem, size = 0x4, offset = 0x4, fixed_abs, tag = 'smem constant byte address 0x4 - core index']
  #allocation1 [shape = 'u32[72,128]{1,0:T(1,128)}', space=vmem, size = 0x9000, scoped, tag = 'internal scratch']
  %s0 = inlined_call_operand.vmem [shape: f32[2,16,128], index: 0, kind: input, shape index: {}]
  %s1 = inlined_call_operand.vmem [shape: f32[17,9], index: 1, kind: input, shape index: {}]
  %s2 = inlined_call_operand.hbm [shape: f32[2,16,128], index: 2, kind: output, shape index: {}]
  %s3 = sld [smem:[#allocation0]]
  $region18: #{tpu_custom_call.1} parent=0
    _
  %s5 = ssub.s32 1, %s3
  %s6 = scalar_select 0, %s5, %s3
  $region1: #{tpu_custom_call.1} parent=0
    #allocation2 [shape = 'u8[16384]{0}', space=vmem, size = 0x4000, scoped, tag = 'output window, operand 0, single buffered']
    #allocation3 [shape = 's32[1]{0}', space=sflag, size = 0x4, scoped, tag = 'scoped memory for tpu_custom_call.1']
    %7 = vsyncpa [#allocation3], 0
    // Predicated region
    $region2: #{tpu_custom_call.1} parent=1 // pred_check
      _
    $region3: #{tpu_custom_call.1} parent=1 // pred_check_branch
      %9 = sbr.rel (0) target = $region5
    $region4: #{tpu_custom_call.1} parent=1 // pred_region
      _
    $region5: #{tpu_custom_call.1} parent=1 // pred_fallthru
      _
    // Predicated region
    $region6: #{tpu_custom_call.1} parent=1 // pred_check
      _
    $region7: #{tpu_custom_call.1} parent=1 // pred_check_branch
      %11 = sbr.rel (0) target = $region9
    $region8: #{tpu_custom_call.1} parent=1 // pred_region
      _
    $region9: #{tpu_custom_call.1} parent=1 // pred_fallthru
      _
    %v12 = vld [vmem:[%s0] sm:$0xff]
    %v13 = vld [vmem:[%s0 + $0x8] sm:$0xff]
    %v14 = vld [vmem:[%s0 + $0x10] sm:$0xff]
    %v15 = vld [vmem:[%s0 + $0x18] sm:$0xff]
    %16 = vadd.xlane.f32.xlu0 %v12
    %v17 = vpop.xlane.xlu0 %16
    %18 = vadd.xlane.f32.xlu0 %v13
    %v19 = vpop.xlane.xlu0 %18
    %20 = vadd.xlane.f32.xlu0 %v14
    %v21 = vpop.xlane.xlu0 %20
    %22 = vadd.xlane.f32.xlu0 %v15
    %v23 = vpop.xlane.xlu0 %22
    %v24 = vrcp.pop 128.0
    %v25 = vmul.f32 128.0, %v24
    %v26 = vsub.f32 1.0, %v25
    %v27 = vmul.f32 %v24, %v26
    %v28 = vadd.f32 %v24, %v27
    %vm29 = vweird.f32 %v24
    %v30 = vsel %vm29, %v24, %v28
    %v31 = vmul.f32 %v17, %v30
    %v32 = vmul.f32 %v19, %v30
    %v33 = vmul.f32 %v21, %v30
    %v34 = vmul.f32 %v23, %v30
    %v35 = vld [vmem:[%s1] sm:$0xff]
    %v36 = vld [vmem:[%s1 + $0x8] sm:$0xff]
    %v37 = vld [vmem:[%s1 + $0x10] sm:$0x1]
    %v38 = vmul.f32 %v35, %v31
    %v39 = vmul.f32 %v36, %v32
    %v40 = vmul.f32 %v35, %v33
    %v41 = vmul.f32 %v36, %v34
    %vm42 = vcmask 31744
    %v43 = vsel %vm42, %v38, 0.0
    %v44 = vsel %vm42, %v39, 0.0
    %v45 = vadd.f32 %v43, %v44
    %v46 = vrot.slane %v45, 4
    %v47 = vadd.f32 %v45, %v46
    %v48 = vrot.slane %v47, 2
    %v49 = vadd.f32 %v47, %v48
    %v50 = vrot.slane %v49, 1
    %v51 = vadd.f32 %v49, %v50
    %v52 = vsel %vm42, %v40, 0.0
    %v53 = vsel %vm42, %v41, 0.0
    %v54 = vadd.f32 %v52, %v53
    %v55 = vrot.slane %v54, 4
    %v56 = vadd.f32 %v54, %v55
    %v57 = vrot.slane %v56, 2
    %v58 = vadd.f32 %v56, %v57
    %v59 = vrot.slane %v58, 1
    %v60 = vadd.f32 %v58, %v59
    %v61 = vadd.f32 %v51, %v37
    %v62 = vadd.f32 %v60, %v37
    %v63 = vmax.f32 %v61, 0.0
    %v64 = vmax.f32 %v62, 0.0
    %v65 = vperm.slane %v63, 0
    %v66 = vperm.slane %v64, 0
    %69 = vrot.lane.b32.xlu0 %v65, 4
    %v70 = vpop.permute.xlu0 %69
    %71 = vrot.lane.b32.xlu0 %v66, 4
    %v72 = vpop.permute.xlu0 %71
    %v75 = vmul.f32 %v35, %v70
    %v76 = vmul.f32 %v36, %v70
    %v77 = vmul.f32 %v35, %v72
    %v78 = vmul.f32 %v36, %v72
    %83 = vrot.lane.b32.xlu0 %v75, 124
    %v84 = vpop.permute.xlu0 %83
    %85 = vrot.lane.b32.xlu0 %v76, 124
    %v86 = vpop.permute.xlu0 %85
    %87 = vrot.lane.b32.xlu0 %v77, 124
    %v88 = vpop.permute.xlu0 %87
    %89 = vrot.lane.b32.xlu0 %v78, 124
    %v90 = vpop.permute.xlu0 %89
    %v95 = vsel %vm42, %v84, 0.0
    %96 = vadd.xlane.f32.xlu0 %v95
    %v97 = vpop.xlane.xlu0 %96
    %v98 = vsel %vm42, %v86, 0.0
    %99 = vadd.xlane.f32.xlu0 %v98
    %v100 = vpop.xlane.xlu0 %99
    %v101 = vsel %vm42, %v88, 0.0
    %102 = vadd.xlane.f32.xlu0 %v101
    %v103 = vpop.xlane.xlu0 %102
    %v104 = vsel %vm42, %v90, 0.0
    %105 = vadd.xlane.f32.xlu0 %v104
    %v106 = vpop.xlane.xlu0 %105
    %v107 = vadd.f32 %v97, %v35
    %v108 = vadd.f32 %v100, %v36
    %v109 = vadd.f32 %v103, %v35
    %v110 = vadd.f32 %v106, %v36
    %v111 = vmul.f32 %v107, 0.5
    %v112 = vmul.f32 %v108, 0.5
    %v113 = vmul.f32 %v109, 0.5
    %v114 = vmul.f32 %v110, 0.5
    %v115 = vtanh.pop %v111
    %v116 = vtanh.pop %v112
    %v117 = vtanh.pop %v113
    %v118 = vtanh.pop %v114
    %v119 = vadd.f32 %v115, 1.0
    %v120 = vadd.f32 %v116, 1.0
    %v121 = vadd.f32 %v117, 1.0
    %v122 = vadd.f32 %v118, 1.0
    %v123 = vmul.f32 %v119, 0.5
    %v124 = vmul.f32 %v120, 0.5
    %v125 = vmul.f32 %v121, 0.5
    %v126 = vmul.f32 %v122, 0.5
    %128 = vset.pattern.permute.xlu0 8
    %129 = vperm.xlu0 %128, %v123
    %v130 = vpop.permute.xlu0 %129
    %133 = vset.pattern.permute.xlu0 8
    %134 = vperm.xlu0 %133, %v124
    %v135 = vpop.permute.xlu0 %134
    %138 = vset.pattern.permute.xlu0 8
    %139 = vperm.xlu0 %138, %v125
    %v140 = vpop.permute.xlu0 %139
    %143 = vset.pattern.permute.xlu0 8
    %144 = vperm.xlu0 %143, %v126
    %v145 = vpop.permute.xlu0 %144
    %v147 = vadd.f32 %v12, %v130
    %v148 = vadd.f32 %v13, %v135
    %v149 = vadd.f32 %v14, %v140
    %v150 = vadd.f32 %v15, %v145
    %151 = vst [vmem:[#allocation2] sm:$0xff] %v147
    %152 = vst [vmem:[#allocation2 + $0x8] sm:$0xff] %v148
    %153 = vst [vmem:[#allocation2 + $0x10] sm:$0xff] %v149
    %154 = vst [vmem:[#allocation2 + $0x18] sm:$0xff] %v150
    // Predicated region
    $region10: #{tpu_custom_call.1} parent=1 // pred_check
      _
    $region11: #{tpu_custom_call.1} parent=1 // pred_check_branch
      %156 = sbr.rel (0) target = $region13
    $region12: #{tpu_custom_call.1} parent=1 // pred_region
      %158 = vsyncadd [#allocation3], 0
      %s159 = sshll.u32 [#allocation2], 4
      %s160 = int_to_ptr.vmem [resolvable:$true] %s159
      %s161 = sshll.u32 %s2, 4
      %s162 = int_to_ptr.hbm [resolvable:$true] %s161
      %167 = dma.vmem_to_hbm [thread:$0]  %s160, 512, %s162, [#allocation3], 128, 128, 8
    $region13: #{tpu_custom_call.1} parent=1 // pred_fallthru
      _
    // Predicated region
    $region14: #{tpu_custom_call.1} parent=1 // pred_check
      _
    $region15: #{tpu_custom_call.1} parent=1 // pred_check_branch
      %169 = sbr.rel (0) target = $region17
    $region16: #{tpu_custom_call.1} parent=1 // pred_region
      %171 = dma.done [#allocation3], 512
    $region17: #{tpu_custom_call.1} parent=1 // pred_fallthru
      _
    %172 = vsyncpa [#allocation3], 1

</llo_original>
